<compile_context>
chip_gen: v7x
topology: tpu7x:2x2x1
jax: 0.10.0
libtpu: 0.0.40
codegen_flags: <defaults>
</compile_context>

<pallas_src>
import functools
import math

import jax
import jax.numpy as jnp
from jax import lax
from jax.experimental import pallas as pl
from jax.experimental.pallas import tpu as pltpu


# --------------------------------------------------------------------------
# Pallas kernel: attention + diagonal band mask + per-(batch, s-tile) sums
# --------------------------------------------------------------------------
def _aligner_kernel(params_ref, sync_ref, textT_ref,          # inputs
                    attn_ref, diag_ref, num_ref, den_ref,     # outputs
                    *, inv_temperature, s_tile, qk_dtype):
    bt, ts, lt = attn_ref.shape
    shape = (bt, ts, lt)

    # Packed per-batch scalars (Bt, 1, 4): [tlen, slen, attn_k, width] (f32).
    tlen   = params_ref[:, :, 0:1]     # (Bt, 1, 1)
    slen   = params_ref[:, :, 1:2]
    attn_k = params_ref[:, :, 2:3]
    width  = params_ref[:, :, 3:4]

    # Fold 1/temperature into q (D-wide multiply, not (Ts, L_t)-wide divide).
    q  = sync_ref[...].astype(jnp.float32) * inv_temperature   # (Bt, Ts, D)
    kT = textT_ref[...].astype(jnp.float32)                    # (Bt, D, L_t)
    if qk_dtype is not None:                                    # optional bf16 on v6e/v7x
        q, kT = q.astype(qk_dtype), kT.astype(qk_dtype)

    # Batched scores on the MXU; contraction over D (already on RHS sublanes).
    scores = jnp.einsum('bsd,bdt->bst', q, kT,
                        preferred_element_type=jnp.float32)    # (Bt, Ts, L_t)

    # Absolute (row, col) indices; comparisons in f32 (lengths exactly representable).
    s_off = (pl.program_id(1) * s_tile).astype(jnp.float32)
    row_f = lax.broadcasted_iota(jnp.int32, shape, 1).astype(jnp.float32) + s_off
    col_f = lax.broadcasted_iota(jnp.int32, shape, 2).astype(jnp.float32)
    pad = jnp.logical_or(row_f >= slen, col_f >= tlen)

    # NaN-safe masked softmax over the text axis
    # (== masked_fill(-inf) + softmax + masked_fill(isnan, 0) in the reference).
    logits = jnp.where(pad, -1e30, scores)
    m = jnp.max(logits, axis=-1, keepdims=True)
    e = jnp.where(pad, 0.0, jnp.exp(logits - m))
    s = jnp.sum(e, axis=-1, keepdims=True)
    inv = 1.0 / jnp.where(s > 0.0, s, 1.0)      # exact; only (Bt, Ts, 1) wide
    attn = e * inv                               # padded rows -> 0

    # Diagonal band mask: keep where  -width <= col - attn_k*row <= width
    cond = col_f - attn_k * row_f
    diag = jnp.where(jnp.logical_and(cond + width >= 0.0, cond - width <= 0.0),
                     1.0, 0.0)

    attn_ref[...] = attn.astype(attn_ref.dtype)
    diag_ref[...] = diag.astype(diag_ref.dtype)

    # Per-(batch, s-tile) diagonal-focus partial sums (attn already padding-masked).
    num = jnp.sum(jnp.sum(attn * diag, axis=2, keepdims=True), axis=1, keepdims=True)
    den = jnp.sum(jnp.sum(attn, axis=2, keepdims=True), axis=1, keepdims=True)
    num_ref[...] = num.reshape(num_ref.shape)
    den_ref[...] = den.reshape(den_ref.shape)


# --------------------------------------------------------------------------
# VMEM-aware tile selection
# --------------------------------------------------------------------------
def _select_tiles(B, L_s, L_t, D, attn_bytes, diag_bytes, budget_bytes):
    """Pick (Bt, Ts) so that double-buffered I/O + live intermediates fit budget."""
    def step_bytes(bt, ts):
        io = bt * ts * L_t * (attn_bytes + diag_bytes)          # outputs
        io += bt * ts * D * 4 + bt * D * L_t * 4 + bt * 4 * 4   # inputs
        interm = bt * ts * L_t * 4 * 3                          # live f32 temporaries
        return 2 * io + interm                                  # x2 double-buffer on I/O

    # Cap Bt at B//2 so the batch grid axis has >= 2 steps (v7x megacore).
    bt_cap = 1 if B <= 1 else max(1, min(8, B // 2))
    bt_cands = [d for d in range(bt_cap, 0, -1) if B % d == 0]

    # Ts candidates: full L_s, then multiples of 16 descending (bf16-safe sublanes).
    ts_cands = [L_s]
    t = (L_s // 16) * 16
    while t >= 16:
        if t < L_s:
            ts_cands.append(t)
        t -= 16

    for bt in bt_cands:
        for ts in ts_cands:
            if step_bytes(bt, ts) <= budget_bytes:
                return bt, ts, step_bytes(bt, ts)
    bt, ts = 1, (16 if L_s >= 16 else L_s)       # fallback: smallest tile
    return bt, ts, step_bytes(bt, ts)


# --------------------------------------------------------------------------
# Wrapper (glue in plain JAX)
# --------------------------------------------------------------------------
def text_video_aligner_forward(text_emb, sync_emb, text_lens, sync_lens, *,
                               d_model, n_head, band_width, band_mask_factor,
                               repeat_num, batch_tile=None, s_tile=None,
                               attn_dtype=jnp.float32,
                               diag_mask_dtype=jnp.bfloat16,
                               qk_dtype=None,
                               vmem_budget_bytes=24 * 1024 * 1024):
    B, L_t, D = text_emb.shape
    _, L_s, _ = sync_emb.shape
    d_k = d_model // n_head
    inv_temperature = 1.0 / math.sqrt(d_k)

    attn_bytes = jnp.dtype(attn_dtype).itemsize
    diag_bytes = jnp.dtype(diag_mask_dtype).itemsize
    auto_bt, auto_ts, est_bytes = _select_tiles(
        B, L_s, L_t, D, attn_bytes, diag_bytes, vmem_budget_bytes)
    Bt = batch_tile if batch_tile is not None else auto_bt
    Ts = s_tile if s_tile is not None else auto_ts
    assert B % Bt == 0, "batch_tile must divide the batch size"
    n_b = B // Bt
    n_s = pl.cdiv(L_s, Ts)

    # Packed per-batch scalars: [tlen, slen, attn_k, width] as (B, 1, 4) f32.
    tlen_f = text_lens.astype(jnp.float32)
    slen_f = sync_lens.astype(jnp.float32)
    attn_k = tlen_f / slen_f
    width = jnp.minimum(tlen_f / float(band_mask_factor), float(band_width))
    params = jnp.stack([tlen_f, slen_f, attn_k, width], axis=-1).reshape(B, 1, 4)

    # Pre-transposed keys so the MXU RHS has the contraction on the sublane axis.
    text_t = jnp.swapaxes(text_emb, 1, 2)        # (B, D, L_t), tiny at D=32

    kernel = functools.partial(_aligner_kernel, inv_temperature=inv_temperature,
                               s_tile=Ts, qk_dtype=qk_dtype)

    vmem_limit = int(min(max(est_bytes * 3 // 2, 16 * 1024 * 1024),
                         40 * 1024 * 1024))

    grid_spec = pltpu.PrefetchScalarGridSpec(
        num_scalar_prefetch=0,
        grid=(n_b, n_s),
        in_specs=[
            pl.BlockSpec((Bt, 1, 4), lambda b, s: (b, 0, 0)),      # packed scalars
            pl.BlockSpec((Bt, Ts, D), lambda b, s: (b, s, 0)),     # sync_emb (query)
            pl.BlockSpec((Bt, D, L_t), lambda b, s: (b, 0, 0)),    # text_emb^T (key)
        ],
        out_specs=[
            pl.BlockSpec((Bt, Ts, L_t), lambda b, s: (b, s, 0)),   # attn (true L_t)
            pl.BlockSpec((Bt, Ts, L_t), lambda b, s: (b, s, 0)),   # diag mask (true L_t)
            pl.BlockSpec((Bt, 1, 1, 1), lambda b, s: (b, s, 0, 0)),  # num partial sums
            pl.BlockSpec((Bt, 1, 1, 1), lambda b, s: (b, s, 0, 0)),  # den partial sums
        ],
    )

    attn_scores, diagonal_mask, num, den = pl.pallas_call(
        kernel,
        grid_spec=grid_spec,
        out_shape=(
            jax.ShapeDtypeStruct((B, L_s, L_t), attn_dtype),
            jax.ShapeDtypeStruct((B, L_s, L_t), diag_mask_dtype),
            jax.ShapeDtypeStruct((B, n_s, 1, 1), jnp.float32),
            jax.ShapeDtypeStruct((B, n_s, 1, 1), jnp.float32),
        ),
        compiler_params=pltpu.CompilerParams(
            dimension_semantics=("parallel", "parallel"),
            vmem_limit_bytes=vmem_limit),
    )(params, sync_emb, text_t)

    # Tiny per-batch reduction over L_s tiles + loss.
    num_b = jnp.sum(num[:, :, 0, 0], axis=1)
    den_b = jnp.sum(den[:, :, 0, 0], axis=1)
    diagonal_focus_rate = num_b / den_b
    diagonal_loss = -jnp.mean(diagonal_focus_rate)

    # Repeated sync non-padding mask (pure index/bool glue).
    sync_masks = jnp.arange(L_s)[None, :] >= sync_lens[:, None]     # True = pad
    sync_nonpadding = jnp.logical_not(sync_masks)[:, :, None]       # (B, L_s, 1)
    repeated_sync_nonpadding = jnp.repeat(sync_nonpadding, repeat_num, axis=1)

    repeated_context = None  # the reference module returns None here
    return (repeated_context, attn_scores, repeated_sync_nonpadding,
            diagonal_loss, diagonal_mask)


# --------------------------------------------------------------------------
# Pure-JAX reference (mirrors the PyTorch math) for a correctness check
# --------------------------------------------------------------------------
def _reference_forward(text_emb, sync_emb, text_lens, sync_lens, *,
                       d_model, n_head, band_width, band_mask_factor,
                       repeat_num):
    B, L_t, D = text_emb.shape
    _, L_s, _ = sync_emb.shape
    temperature = math.sqrt(d_model // n_head)

    text_masks = jnp.arange(L_t)[None, :] >= text_lens[:, None]
    sync_masks = jnp.arange(L_s)[None, :] >= sync_lens[:, None]
    attn_masks = sync_masks[:, :, None] | text_masks[:, None, :]     # (B, L_s, L_t)

    scores = jnp.einsum('bsd,btd->bst', sync_emb, text_emb) / temperature
    logits = jnp.where(attn_masks, -jnp.inf, scores)
    attn = jax.nn.softmax(logits, axis=-1)
    attn = jnp.where(jnp.isnan(attn), 0.0, attn)

    attn_ks = text_lens.astype(jnp.float32) / sync_lens.astype(jnp.float32)
    width = jnp.minimum(text_lens.astype(jnp.float32) / band_mask_factor,
                        float(band_width))
    x = jnp.arange(L_s, dtype=jnp.float32)[None, :, None]
    y = jnp.arange(L_t, dtype=jnp.float32)[None, None, :]
    cond = y - attn_ks[:, None, None] * x
    mask1 = jnp.where(cond + width[:, None, None] < 0, 0.0, 1.0)
    mask2 = jnp.where(cond - width[:, None, None] > 0, 0.0, 1.0)
    diag_mask = mask1 * mask2

    attn_pad = attn * (1.0 - sync_masks.astype(jnp.float32))[:, :, None]
    attn_pad = attn_pad * (1.0 - text_masks.astype(jnp.float32))[:, None, :]
    diag_attn = attn_pad * diag_mask
    focus = diag_attn.sum(-1).sum(-1) / attn_pad.sum(-1).sum(-1)
    loss = -jnp.mean(focus)
    return attn, diag_mask, loss


# --------------------------------------------------------------------------
if __name__ == "__main__":
    # model_config (synthetic, deterministic)
    model_config = {
        "transformer": {"encoder_hidden": 32},
        "aligner": {
            "n_head": 2,
            "dropout": 0.1,
            "diag_band_width": 3,
            "band_mask_factor": 5,
            "repeat_num": 2,
            "residual_connection": True,
        },
    }
    d_model = model_config["transformer"]["encoder_hidden"]
    cfg = dict(
        d_model=d_model,
        n_head=model_config["aligner"]["n_head"],
        band_width=model_config["aligner"]["diag_band_width"],
        band_mask_factor=model_config["aligner"]["band_mask_factor"],
        repeat_num=model_config["aligner"]["repeat_num"],
    )

    B, L_t, L_s = 2, 16, 24
    key = jax.random.PRNGKey(0)
    k1, k2 = jax.random.split(key)
    text_emb = jax.random.normal(k1, (B, L_t, d_model), dtype=jnp.float32)
    sync_emb = jax.random.normal(k2, (B, L_s, d_model), dtype=jnp.float32)
    text_lens = jnp.array([16, 11], dtype=jnp.int32)   # max == L_t
    sync_lens = jnp.array([24, 18], dtype=jnp.int32)   # max == L_s

    outs = text_video_aligner_forward(text_emb, sync_emb, text_lens, sync_lens, **cfg)
    (repeated_context, attn_scores, repeated_sync_nonpadding,
     diagonal_loss, diagonal_mask) = outs
    jax.block_until_ready((attn_scores, repeated_sync_nonpadding,
                           diagonal_loss, diagonal_mask))

    # correctness check against the pure-JAX reference
    ref_attn, ref_diag, ref_loss = _reference_forward(
        text_emb, sync_emb, text_lens, sync_lens, **cfg)
    assert repeated_context is None
    assert attn_scores.shape == (B, L_s, L_t)
    assert diagonal_mask.shape == (B, L_s, L_t)
    assert repeated_sync_nonpadding.shape == (B, L_s * cfg["repeat_num"], 1)
    # tolerance accounts for MXU f32 accumulation / fold-of-temperature rounding
    assert jnp.allclose(attn_scores, ref_attn, atol=2e-3, rtol=2e-3)
    assert jnp.allclose(diagonal_mask.astype(jnp.float32), ref_diag, atol=1e-6)
    assert jnp.allclose(diagonal_loss, ref_loss, atol=2e-3, rtol=2e-3)

    print("KERNEL_OK")
</pallas_src>

<mosaic_0001>
module attributes {stable_mosaic.version = 11 : i64} {
  func.func @_aligner_kernel(%arg0: i32, %arg1: i32, %arg2: memref<1x1x4xf32, #tpu.memory_space<vmem>>, %arg3: memref<1x24x32xf32, #tpu.memory_space<vmem>>, %arg4: memref<1x32x16xf32, #tpu.memory_space<vmem>>, %arg5: memref<1x24x16xf32, #tpu.memory_space<vmem>>, %arg6: memref<1x24x16xbf16, #tpu.memory_space<vmem>>, %arg7: memref<1x1x1x1xf32, #tpu.memory_space<vmem>>, %arg8: memref<1x1x1x1xf32, #tpu.memory_space<vmem>>) attributes {dimension_semantics = [#tpu.dimension_semantics<parallel>, #tpu.dimension_semantics<parallel>], iteration_bounds = array<i64: 2, 1>, scalar_prefetch = 0 : i64, scratch_operands = 0 : i64, tpu.core_type = #tpu.core_type<tc>, window_params = [{transform_indices = @transform_0, window_bounds = array<i64: 1, 1, 4>}, {transform_indices = @transform_1, window_bounds = array<i64: 1, 24, 32>}, {transform_indices = @transform_2, window_bounds = array<i64: 1, 32, 16>}, {transform_indices = @transform_3, window_bounds = array<i64: 1, 24, 16>}, {transform_indices = @transform_4, window_bounds = array<i64: 1, 24, 16>}, {transform_indices = @transform_5, window_bounds = array<i64: 1, 1, 1, 1>}, {transform_indices = @transform_6, window_bounds = array<i64: 1, 1, 1, 1>}]} {
    %c0 = arith.constant 0 : index
    %c0_0 = arith.constant 0 : index
    %c0_1 = arith.constant 0 : index
    %0 = vector.load %arg2[%c0, %c0_0, %c0_1] : memref<1x1x4xf32, #tpu.memory_space<vmem>>, vector<1x1x1xf32>
    %c0_2 = arith.constant 0 : index
    %c0_3 = arith.constant 0 : index
    %c1 = arith.constant 1 : index
    %1 = vector.load %arg2[%c0_2, %c0_3, %c1] : memref<1x1x4xf32, #tpu.memory_space<vmem>>, vector<1x1x1xf32>
    %c0_4 = arith.constant 0 : index
    %c0_5 = arith.constant 0 : index
    %c2 = arith.constant 2 : index
    %2 = vector.load %arg2[%c0_4, %c0_5, %c2] : memref<1x1x4xf32, #tpu.memory_space<vmem>>, vector<1x1x1xf32>
    %c0_6 = arith.constant 0 : index
    %c0_7 = arith.constant 0 : index
    %c3 = arith.constant 3 : index
    %3 = vector.load %arg2[%c0_6, %c0_7, %c3] : memref<1x1x4xf32, #tpu.memory_space<vmem>>, vector<1x1x1xf32>
    %c0_8 = arith.constant 0 : index
    %c0_9 = arith.constant 0 : index
    %c0_10 = arith.constant 0 : index
    %4 = vector.load %arg3[%c0_8, %c0_9, %c0_10] : memref<1x24x32xf32, #tpu.memory_space<vmem>>, vector<1x24x32xf32>
    %cst = arith.constant 2.500000e-01 : f32
    %5 = vector.broadcast %cst : f32 to vector<1x24x32xf32>
    %6 = arith.mulf %4, %5 : vector<1x24x32xf32>
    %c0_11 = arith.constant 0 : index
    %c0_12 = arith.constant 0 : index
    %c0_13 = arith.constant 0 : index
    %7 = vector.load %arg4[%c0_11, %c0_12, %c0_13] : memref<1x32x16xf32, #tpu.memory_space<vmem>>, vector<1x32x16xf32>
    "tpu.trace_start"() <{level = 10 : i32, message = "bsd,bdt->bst"}> : () -> ()
    %cst_14 = arith.constant dense<0.000000e+00> : vector<1x24x16xf32>
    %8 = tpu.matmul %6, %7, %cst_14 {dimension_numbers = #tpu.dot_dimension_numbers<[2], [1], [1], [2], [0, 0, 0, 1, 1, 2], [0], [0]>} : vector<1x24x32xf32>, vector<1x32x16xf32>, vector<1x24x16xf32> -> vector<1x24x16xf32>
    "tpu.trace_stop"() : () -> ()
    %c24_i32 = arith.constant 24 : i32
    %9 = arith.muli %arg1, %c24_i32 : i32
    %10 = arith.sitofp %9 : i32 to f32
    %11 = tpu.iota {dimensions = array<i32: 1>} : vector<1x24x16xi32>
    %12 = arith.sitofp %11 : vector<1x24x16xi32> to vector<1x24x16xf32>
    %13 = vector.broadcast %10 : f32 to vector<1x24x16xf32>
    %14 = arith.addf %12, %13 : vector<1x24x16xf32>
    %15 = tpu.iota {dimensions = array<i32: 2>} : vector<1x24x16xi32>
    %16 = arith.sitofp %15 : vector<1x24x16xi32> to vector<1x24x16xf32>
    %17 = vector.broadcast %1 : vector<1x1x1xf32> to vector<1x24x16xf32>
    %18 = arith.cmpf oge, %14, %17 : vector<1x24x16xf32>
    %19 = vector.broadcast %0 : vector<1x1x1xf32> to vector<1x24x16xf32>
    %20 = arith.cmpf oge, %16, %19 : vector<1x24x16xf32>
    %21 = arith.ori %18, %20 : vector<1x24x16xi1>
    %cst_15 = arith.constant -1.000000e+30 : f32
    %22 = vector.broadcast %cst_15 : f32 to vector<1x24x16xf32>
    %23 = arith.select %21, %22, %8 : vector<1x24x16xi1>, vector<1x24x16xf32>
    %cst_16 = arith.constant dense<0xFF800000> : vector<1x24xf32>
    %24 = vector.multi_reduction <maximumf>, %23, %cst_16 [2] : vector<1x24x16xf32> to vector<1x24xf32>
    %25 = vector.shape_cast %24 : vector<1x24xf32> to vector<1x24x1xf32>
    %26 = vector.broadcast %25 : vector<1x24x1xf32> to vector<1x24x16xf32>
    %27 = arith.subf %23, %26 : vector<1x24x16xf32>
    %28 = math.exp %27 : vector<1x24x16xf32>
    %cst_17 = arith.constant 0.000000e+00 : f32
    %29 = vector.broadcast %cst_17 : f32 to vector<1x24x16xf32>
    %30 = arith.select %21, %29, %28 : vector<1x24x16xi1>, vector<1x24x16xf32>
    %cst_18 = arith.constant dense<0.000000e+00> : vector<1x24xf32>
    %31 = vector.multi_reduction <add>, %30, %cst_18 [2] : vector<1x24x16xf32> to vector<1x24xf32>
    %32 = vector.shape_cast %31 : vector<1x24xf32> to vector<1x24x1xf32>
    %cst_19 = arith.constant 0.000000e+00 : f32
    %33 = vector.broadcast %cst_19 : f32 to vector<1x24x1xf32>
    %34 = arith.cmpf ogt, %32, %33 : vector<1x24x1xf32>
    %cst_20 = arith.constant 1.000000e+00 : f32
    %35 = vector.broadcast %cst_20 : f32 to vector<1x24x1xf32>
    %36 = arith.select %34, %32, %35 : vector<1x24x1xi1>, vector<1x24x1xf32>
    %cst_21 = arith.constant 1.000000e+00 : f32
    %37 = vector.broadcast %cst_21 : f32 to vector<1x24x1xf32>
    %38 = arith.divf %37, %36 : vector<1x24x1xf32>
    %39 = vector.broadcast %38 : vector<1x24x1xf32> to vector<1x24x16xf32>
    %40 = arith.mulf %30, %39 : vector<1x24x16xf32>
    %41 = vector.broadcast %2 : vector<1x1x1xf32> to vector<1x24x16xf32>
    %42 = arith.mulf %41, %14 : vector<1x24x16xf32>
    %43 = arith.subf %16, %42 : vector<1x24x16xf32>
    %44 = vector.broadcast %3 : vector<1x1x1xf32> to vector<1x24x16xf32>
    %45 = arith.addf %43, %44 : vector<1x24x16xf32>
    %cst_22 = arith.constant 0.000000e+00 : f32
    %46 = vector.broadcast %cst_22 : f32 to vector<1x24x16xf32>
    %47 = arith.cmpf oge, %45, %46 : vector<1x24x16xf32>
    %48 = vector.broadcast %3 : vector<1x1x1xf32> to vector<1x24x16xf32>
    %49 = arith.subf %43, %48 : vector<1x24x16xf32>
    %cst_23 = arith.constant 0.000000e+00 : f32
    %50 = vector.broadcast %cst_23 : f32 to vector<1x24x16xf32>
    %51 = arith.cmpf ole, %49, %50 : vector<1x24x16xf32>
    %52 = arith.andi %47, %51 : vector<1x24x16xi1>
    %cst_24 = arith.constant 1.000000e+00 : f32
    %cst_25 = arith.constant 0.000000e+00 : f32
    %53 = vector.broadcast %cst_24 : f32 to vector<1x24x16xf32>
    %54 = vector.broadcast %cst_25 : f32 to vector<1x24x16xf32>
    %55 = arith.select %52, %53, %54 : vector<1x24x16xi1>, vector<1x24x16xf32>
    %c0_26 = arith.constant 0 : index
    %c0_27 = arith.constant 0 : index
    %c0_28 = arith.constant 0 : index
    %56 = vector.load %arg5[%c0_26, %c0_27, %c0_28] : memref<1x24x16xf32, #tpu.memory_space<vmem>>, vector<1x24x16xf32>
    tpu.vector_store %arg5[%c0_26, %c0_27, %c0_28], %40 {strides = array<i32>} : memref<1x24x16xf32, #tpu.memory_space<vmem>>, vector<1x24x16xf32>,
    %57 = arith.truncf %55 : vector<1x24x16xf32> to vector<1x24x16xbf16>
    %c0_29 = arith.constant 0 : index
    %c0_30 = arith.constant 0 : index
    %c0_31 = arith.constant 0 : index
    %58 = vector.load %arg6[%c0_29, %c0_30, %c0_31] : memref<1x24x16xbf16, #tpu.memory_space<vmem>>, vector<1x24x16xbf16>
    tpu.vector_store %arg6[%c0_29, %c0_30, %c0_31], %57 {strides = array<i32>} : memref<1x24x16xbf16, #tpu.memory_space<vmem>>, vector<1x24x16xbf16>,
    %59 = arith.mulf %40, %55 : vector<1x24x16xf32>
    %cst_32 = arith.constant dense<0.000000e+00> : vector<1x24xf32>
    %60 = vector.multi_reduction <add>, %59, %cst_32 [2] : vector<1x24x16xf32> to vector<1x24xf32>
    %61 = vector.shape_cast %60 : vector<1x24xf32> to vector<1x24x1xf32>
    %cst_33 = arith.constant dense<0.000000e+00> : vector<1x1xf32>
    %62 = vector.multi_reduction <add>, %61, %cst_33 [1] : vector<1x24x1xf32> to vector<1x1xf32>
    %63 = vector.shape_cast %62 : vector<1x1xf32> to vector<1x1x1xf32>
    %cst_34 = arith.constant dense<0.000000e+00> : vector<1x24xf32>
    %64 = vector.multi_reduction <add>, %40, %cst_34 [2] : vector<1x24x16xf32> to vector<1x24xf32>
    %65 = vector.shape_cast %64 : vector<1x24xf32> to vector<1x24x1xf32>
    %cst_35 = arith.constant dense<0.000000e+00> : vector<1x1xf32>
    %66 = vector.multi_reduction <add>, %65, %cst_35 [1] : vector<1x24x1xf32> to vector<1x1xf32>
    %67 = vector.shape_cast %66 : vector<1x1xf32> to vector<1x1x1xf32>
    %68 = vector.shape_cast %63 : vector<1x1x1xf32> to vector<1x1x1x1xf32>
    %c0_36 = arith.constant 0 : index
    %c0_37 = arith.constant 0 : index
    %c0_38 = arith.constant 0 : index
    %c0_39 = arith.constant 0 : index
    %69 = vector.load %arg7[%c0_36, %c0_37, %c0_38, %c0_39] : memref<1x1x1x1xf32, #tpu.memory_space<vmem>>, vector<1x1x1x1xf32>
    tpu.vector_store %arg7[%c0_36, %c0_37, %c0_38, %c0_39], %68 {strides = array<i32>} : memref<1x1x1x1xf32, #tpu.memory_space<vmem>>, vector<1x1x1x1xf32>,
    %70 = vector.shape_cast %67 : vector<1x1x1xf32> to vector<1x1x1x1xf32>
    %c0_40 = arith.constant 0 : index
    %c0_41 = arith.constant 0 : index
    %c0_42 = arith.constant 0 : index
    %c0_43 = arith.constant 0 : index
    %71 = vector.load %arg8[%c0_40, %c0_41, %c0_42, %c0_43] : memref<1x1x1x1xf32, #tpu.memory_space<vmem>>, vector<1x1x1x1xf32>
    tpu.vector_store %arg8[%c0_40, %c0_41, %c0_42, %c0_43], %70 {strides = array<i32>} : memref<1x1x1x1xf32, #tpu.memory_space<vmem>>, vector<1x1x1x1xf32>,
    return
  }
  func.func @transform_0(%arg0: i32, %arg1: i32) -> (i32, i32, i32) {
    %c0_i32 = arith.constant 0 : i32
    %c0_i32_0 = arith.constant 0 : i32
    %c0_i32_1 = arith.constant 0 : i32
    return %arg0, %c0_i32, %c0_i32_0 : i32, i32, i32
  }
  func.func @transform_1(%arg0: i32, %arg1: i32) -> (i32, i32, i32) {
    %c0_i32 = arith.constant 0 : i32
    %c0_i32_0 = arith.constant 0 : i32
    return %arg0, %arg1, %c0_i32 : i32, i32, i32
  }
  func.func @transform_2(%arg0: i32, %arg1: i32) -> (i32, i32, i32) {
    %c0_i32 = arith.constant 0 : i32
    %c0_i32_0 = arith.constant 0 : i32
    %c0_i32_1 = arith.constant 0 : i32
    return %arg0, %c0_i32, %c0_i32_0 : i32, i32, i32
  }
  func.func @transform_3(%arg0: i32, %arg1: i32) -> (i32, i32, i32) {
    %c0_i32 = arith.constant 0 : i32
    %c0_i32_0 = arith.constant 0 : i32
    return %arg0, %arg1, %c0_i32 : i32, i32, i32
  }
  func.func @transform_4(%arg0: i32, %arg1: i32) -> (i32, i32, i32) {
    %c0_i32 = arith.constant 0 : i32
    %c0_i32_0 = arith.constant 0 : i32
    return %arg0, %arg1, %c0_i32 : i32, i32, i32
  }
  func.func @transform_5(%arg0: i32, %arg1: i32) -> (i32, i32, i32, i32) {
    %c0_i32 = arith.constant 0 : i32
    %c0_i32_0 = arith.constant 0 : i32
    %c0_i32_1 = arith.constant 0 : i32
    return %arg0, %arg1, %c0_i32, %c0_i32_0 : i32, i32, i32, i32
  }
  func.func @transform_6(%arg0: i32, %arg1: i32) -> (i32, i32, i32, i32) {
    %c0_i32 = arith.constant 0 : i32
    %c0_i32_0 = arith.constant 0 : i32
    %c0_i32_1 = arith.constant 0 : i32
    return %arg0, %arg1, %c0_i32, %c0_i32_0 : i32, i32, i32, i32
  }
}

</mosaic_0001>

<llo_original>
// kernel: tpu_custom_call.1
$region0: #{tpu_custom_call.1}
  #allocation0 [shape = 'u32[]', space=smem, size = 0x4, offset = 0x4, fixed_abs, tag = 'smem constant byte address 0x4 - core index']
  #allocation1 [shape = 'u32[144,128]{1,0:T(1,128)}', space=vmem, size = 0x12000, scoped, tag = 'internal scratch']
  %s0 = inlined_call_operand.vmem [shape: f32[2,1,4], index: 0, kind: input, shape index: {}]
  %s1 = inlined_call_operand.vmem [shape: f32[2,24,32], index: 1, kind: input, shape index: {}]
  %s2 = inlined_call_operand.vmem [shape: f32[2,32,16], index: 2, kind: input, shape index: {}]
  %s3 = inlined_call_operand.vmem [shape: f32[2,24,16], index: 3, kind: output, shape index: {0}]
  %s4 = inlined_call_operand.vmem [shape: bf16[2,24,16], index: 4, kind: output, shape index: {1}]
  %s5 = inlined_call_operand.vmem [shape: f32[2,1,1,1], index: 5, kind: output, shape index: {2}]
  %s6 = inlined_call_operand.vmem [shape: f32[2,1,1,1], index: 6, kind: output, shape index: {3}]
  %7 = xla_tuple %s3, %s4, %s5, %s6
  %s8 = sld [smem:[#allocation0]]
  $region69: #{tpu_custom_call.1} parent=0
    _
  %s10 = ssub.s32 1, %s8
  %s11 = scalar_select 0, %s10, %s8
  loop: start=0, step=1, limit=4
  $region2: #{tpu_custom_call.1} parent=0 // loop_pre_header
    _
  $region3: #{tpu_custom_call.1} parent=0 // loop_header
    %s13 = sphi 0, %s17
    %p14 = scmp.ge.s32.totalorder %s13, 4
    %s20 = sphi 0, %s32
    %s21 = sphi 0, %s28
    %s22 = sphi 0, %s20
    %s23 = sphi 0, %s21
    %s24 = sphi 0, %s22
    %s25 = sphi 0, %s23
    %s35 = sphi 0, %s37
    %s38 = sphi 0, %s35
    %s39 = sphi 0, %s38
    %s55 = sphi 0, %s39
    %s63 = sphi 0, %s65
    %s66 = sphi 0, %s63
    %s67 = sphi 0, %s66
    %s83 = sphi 0, %s67
    %s89 = sphi 0, %s91
    %s92 = sphi 0, %s89
    %s93 = sphi 0, %s92
    %s109 = sphi 0, %s93
    %s117 = sphi 0, %s119
    %s120 = sphi 0, %s117
    %s121 = sphi 0, %s120
    %s137 = sphi 0, %s121
    %s145 = sphi 0, %s147
    %s148 = sphi 0, %s145
    %s149 = sphi 0, %s148
    %s165 = sphi 0, %s149
    %s173 = sphi 0, %s175
    %s176 = sphi 0, %s173
    %s177 = sphi 0, %s176
    %s193 = sphi 0, %s177
    %s201 = sphi 0, %s203
    %s204 = sphi 0, %s201
    %s205 = sphi 0, %s204
    %s221 = sphi 0, %s205
  $region4: #{tpu_custom_call.1} parent=0 // loop_header_branch
    %16 = sbr.rel (%p14) target = $region8
  $region5: #{tpu_custom_call.1} parent=0 // loop_body
    %s18 = ssub.s32 %s13, 1
    %s19 = ssub.s32 %s13, 2
    %s26 = sadd.s32 1, %s21
    %p27 = scmp.ge.s32.totalorder %s26, 1
    %s28 = scalar_select %p27, 0, %s26
    %s29 = sadd.s32 1, %s20
    %s30 = scalar_select %p27, %s29, %s20
    %p31 = scmp.ge.s32.totalorder %s30, 2
    %s32 = scalar_select %p31, 0, %s30
    %s33 = ssub.s32 %s20, %s32
    %p34 = scmp.eq.s32.totalorder %s33, 0
    %s36 = sadd.s32 %s35, 1
    %s37 = scalar_select %p34, %s35, %s36
    %p40 = pneg %p34
    %p41 = scmp.eq.s32.totalorder %s13, 1
    %p42 = por %p40, %p41
    %p43 = scmp.ne.s32.totalorder %s35, %s38
    %p44 = scmp.eq.s32.totalorder %s13, 0
    %p45 = por %p43, %p44
    %p46 = scmp.ne.s32.totalorder %s35, %s38
    %p47 = scmp.eq.s32.totalorder %s18, 1
    %p48 = por %p46, %p47
    %p49 = scmp.ne.s32.totalorder %s38, %s39
    %p50 = scmp.eq.s32.totalorder %s18, 0
    %p51 = por %p49, %p50
    %p52 = scmp.ne.s32.totalorder %s38, %s39
    %p53 = scmp.eq.s32.totalorder %s19, 1
    %p54 = por %p52, %p53
    %p56 = scmp.ne.s32.totalorder %s39, %s55
    %p57 = scmp.eq.s32.totalorder %s19, 0
    %p58 = por %p56, %p57
    %s59 = ssub.s32 %s20, %s32
    %s60 = ssub.s32 %s21, %s28
    %s61 = sor.u32 %s59, %s60
    %p62 = scmp.eq.s32.totalorder %s61, 0
    %s64 = sadd.s32 %s63, 1
    %s65 = scalar_select %p62, %s63, %s64
    %p68 = pneg %p62
    %p69 = scmp.eq.s32.totalorder %s13, 1
    %p70 = por %p68, %p69
    %p71 = scmp.ne.s32.totalorder %s63, %s66
    %p72 = scmp.eq.s32.totalorder %s13, 0
    %p73 = por %p71, %p72
    %p74 = scmp.ne.s32.totalorder %s63, %s66
    %p75 = scmp.eq.s32.totalorder %s18, 1
    %p76 = por %p74, %p75
    %p77 = scmp.ne.s32.totalorder %s66, %s67
    %p78 = scmp.eq.s32.totalorder %s18, 0
    %p79 = por %p77, %p78
    %p80 = scmp.ne.s32.totalorder %s66, %s67
    %p81 = scmp.eq.s32.totalorder %s19, 1
    %p82 = por %p80, %p81
    %p84 = scmp.ne.s32.totalorder %s67, %s83
    %p85 = scmp.eq.s32.totalorder %s19, 0
    %p86 = por %p84, %p85
    %s87 = ssub.s32 %s20, %s32
    %p88 = scmp.eq.s32.totalorder %s87, 0
    %s90 = sadd.s32 %s89, 1
    %s91 = scalar_select %p88, %s89, %s90
    %p94 = pneg %p88
    %p95 = scmp.eq.s32.totalorder %s13, 1
    %p96 = por %p94, %p95
    %p97 = scmp.ne.s32.totalorder %s89, %s92
    %p98 = scmp.eq.s32.totalorder %s13, 0
    %p99 = por %p97, %p98
    %p100 = scmp.ne.s32.totalorder %s89, %s92
    %p101 = scmp.eq.s32.totalorder %s18, 1
    %p102 = por %p100, %p101
    %p103 = scmp.ne.s32.totalorder %s92, %s93
    %p104 = scmp.eq.s32.totalorder %s18, 0
    %p105 = por %p103, %p104
    %p106 = scmp.ne.s32.totalorder %s92, %s93
    %p107 = scmp.eq.s32.totalorder %s19, 1
    %p108 = por %p106, %p107
    %p110 = scmp.ne.s32.totalorder %s93, %s109
    %p111 = scmp.eq.s32.totalorder %s19, 0
    %p112 = por %p110, %p111
    %s113 = ssub.s32 %s20, %s32
    %s114 = ssub.s32 %s21, %s28
    %s115 = sor.u32 %s113, %s114
    %p116 = scmp.eq.s32.totalorder %s115, 0
    %s118 = sadd.s32 %s117, 1
    %s119 = scalar_select %p116, %s117, %s118
    %p122 = pneg %p116
    %p123 = scmp.eq.s32.totalorder %s13, 1
    %p124 = por %p122, %p123
    %p125 = scmp.ne.s32.totalorder %s117, %s120
    %p126 = scmp.eq.s32.totalorder %s13, 0
    %p127 = por %p125, %p126
    %p128 = scmp.ne.s32.totalorder %s117, %s120
    %p129 = scmp.eq.s32.totalorder %s18, 1
    %p130 = por %p128, %p129
    %p131 = scmp.ne.s32.totalorder %s120, %s121
    %p132 = scmp.eq.s32.totalorder %s18, 0
    %p133 = por %p131, %p132
    %p134 = scmp.ne.s32.totalorder %s120, %s121
    %p135 = scmp.eq.s32.totalorder %s19, 1
    %p136 = por %p134, %p135
    %p138 = scmp.ne.s32.totalorder %s121, %s137
    %p139 = scmp.eq.s32.totalorder %s19, 0
    %p140 = por %p138, %p139
    %s141 = ssub.s32 %s20, %s32
    %s142 = ssub.s32 %s21, %s28
    %s143 = sor.u32 %s141, %s142
    %p144 = scmp.eq.s32.totalorder %s143, 0
    %s146 = sadd.s32 %s145, 1
    %s147 = scalar_select %p144, %s145, %s146
    %p150 = pneg %p144
    %p151 = scmp.eq.s32.totalorder %s13, 1
    %p152 = por %p150, %p151
    %p153 = scmp.ne.s32.totalorder %s145, %s148
    %p154 = scmp.eq.s32.totalorder %s13, 0
    %p155 = por %p153, %p154
    %p156 = scmp.ne.s32.totalorder %s145, %s148
    %p157 = scmp.eq.s32.totalorder %s18, 1
    %p158 = por %p156, %p157
    %p159 = scmp.ne.s32.totalorder %s148, %s149
    %p160 = scmp.eq.s32.totalorder %s18, 0
    %p161 = por %p159, %p160
    %p162 = scmp.ne.s32.totalorder %s148, %s149
    %p163 = scmp.eq.s32.totalorder %s19, 1
    %p164 = por %p162, %p163
    %p166 = scmp.ne.s32.totalorder %s149, %s165
    %p167 = scmp.eq.s32.totalorder %s19, 0
    %p168 = por %p166, %p167
    %s169 = ssub.s32 %s20, %s32
    %s170 = ssub.s32 %s21, %s28
    %s171 = sor.u32 %s169, %s170
    %p172 = scmp.eq.s32.totalorder %s171, 0
    %s174 = sadd.s32 %s173, 1
    %s175 = scalar_select %p172, %s173, %s174
    %p178 = pneg %p172
    %p179 = scmp.eq.s32.totalorder %s13, 1
    %p180 = por %p178, %p179
    %p181 = scmp.ne.s32.totalorder %s173, %s176
    %p182 = scmp.eq.s32.totalorder %s13, 0
    %p183 = por %p181, %p182
    %p184 = scmp.ne.s32.totalorder %s173, %s176
    %p185 = scmp.eq.s32.totalorder %s18, 1
    %p186 = por %p184, %p185
    %p187 = scmp.ne.s32.totalorder %s176, %s177
    %p188 = scmp.eq.s32.totalorder %s18, 0
    %p189 = por %p187, %p188
    %p190 = scmp.ne.s32.totalorder %s176, %s177
    %p191 = scmp.eq.s32.totalorder %s19, 1
    %p192 = por %p190, %p191
    %p194 = scmp.ne.s32.totalorder %s177, %s193
    %p195 = scmp.eq.s32.totalorder %s19, 0
    %p196 = por %p194, %p195
    %s197 = ssub.s32 %s20, %s32
    %s198 = ssub.s32 %s21, %s28
    %s199 = sor.u32 %s197, %s198
    %p200 = scmp.eq.s32.totalorder %s199, 0
    %s202 = sadd.s32 %s201, 1
    %s203 = scalar_select %p200, %s201, %s202
    %p206 = pneg %p200
    %p207 = scmp.eq.s32.totalorder %s13, 1
    %p208 = por %p206, %p207
    %p209 = scmp.ne.s32.totalorder %s201, %s204
    %p210 = scmp.eq.s32.totalorder %s13, 0
    %p211 = por %p209, %p210
    %p212 = scmp.ne.s32.totalorder %s201, %s204
    %p213 = scmp.eq.s32.totalorder %s18, 1
    %p214 = por %p212, %p213
    %p215 = scmp.ne.s32.totalorder %s204, %s205
    %p216 = scmp.eq.s32.totalorder %s18, 0
    %p217 = por %p215, %p216
    %p218 = scmp.ne.s32.totalorder %s204, %s205
    %p219 = scmp.eq.s32.totalorder %s19, 1
    %p220 = por %p218, %p219
    %p222 = scmp.ne.s32.totalorder %s205, %s221
    %p223 = scmp.eq.s32.totalorder %s19, 0
    %p224 = por %p222, %p223
    %p225 = scmp.le.s32.totalorder 1, %s13
    %p226 = scmp.lt.s32.totalorder %s13, 3
    %p227 = pnand %p225, %p226
    %p228 = pneg %p227
    // Predicated region
    $region9: #{tpu_custom_call.1} parent=5 // pred_check
      _
    $region10: #{tpu_custom_call.1} parent=5 // pred_check_branch
      %230 = sbr.rel (%p227) target = $region12
    $region11: #{tpu_custom_call.1} parent=5 // pred_region
      %s231 = ssub.s32 %s13, 1
    $region12: #{tpu_custom_call.1} parent=5 // pred_fallthru
      _
    %p232 = scmp.lt.s32.totalorder %s13, 2
    // Predicated region
    $region13: #{tpu_custom_call.1} parent=5 // pred_check
      %p233 = pneg %p232
    $region14: #{tpu_custom_call.1} parent=5 // pred_check_branch
      %235 = sbr.rel (%p233) target = $region16
    $region15: #{tpu_custom_call.1} parent=5 // pred_region
      // Predicated region
      $region17: #{tpu_custom_call.1} parent=15 // pred_check
        %p236 = pneg %p45
      $region18: #{tpu_custom_call.1} parent=15 // pred_check_branch
        %238 = sbr.rel (%p236) target = $region20
      $region19: #{tpu_custom_call.1} parent=15 // pred_region
        %p239 = scmp.lt.s32.totalorder %s20, 1
        %s240 = scalar_select %p239, %s20, 1
        %s241 = scalar_lea.vmem %s0, %s240
      $region20: #{tpu_custom_call.1} parent=15 // pred_fallthru
        _
      // Predicated region
      $region21: #{tpu_custom_call.1} parent=15 // pred_check
        %p242 = pneg %p73
      $region22: #{tpu_custom_call.1} parent=15 // pred_check_branch
        %244 = sbr.rel (%p242) target = $region24
      $region23: #{tpu_custom_call.1} parent=15 // pred_region
        %s245 = smul.u32 3, %s21
        %p246 = scmp.lt.s32.totalorder %s20, 1
        %s247 = scalar_select %p246, %s20, 1
        %p248 = scmp.lt.s32.totalorder %s245, 2
        %s249 = scalar_select %p248, %s245, 2
        %s250 = smul.addr %s247, 3
        %s251 = sadd.s32 %s249, %s250
        %s252 = smul.addr %s251, 8
        %s253 = scalar_lea.vmem %s1, %s252
        %s254 = smul.u32 3, %s21
      $region24: #{tpu_custom_call.1} parent=15 // pred_fallthru
        _
      // Predicated region
      $region25: #{tpu_custom_call.1} parent=15 // pred_check
        %p255 = pneg %p99
      $region26: #{tpu_custom_call.1} parent=15 // pred_check_branch
        %257 = sbr.rel (%p255) target = $region28
      $region27: #{tpu_custom_call.1} parent=15 // pred_region
        %p258 = scmp.lt.s32.totalorder %s20, 1
        %s259 = scalar_select %p258, %s20, 1
        %s260 = smul.addr %s259, 4
        %s261 = smul.addr %s260, 8
        %s262 = scalar_lea.vmem %s2, %s261
      $region28: #{tpu_custom_call.1} parent=15 // pred_fallthru
        _
    $region16: #{tpu_custom_call.1} parent=5 // pred_fallthru
      _
    %p263 = scmp.le.s32.totalorder 1, %s13
    %p264 = scmp.lt.s32.totalorder %s13, 3
    %p265 = pnand %p263, %p264
    %p266 = pneg %p265
    // Predicated region
    $region29: #{tpu_custom_call.1} parent=5 // pred_check
      _
    $region30: #{tpu_custom_call.1} parent=5 // pred_check_branch
      %268 = sbr.rel (%p265) target = $region32
    $region31: #{tpu_custom_call.1} parent=5 // pred_region
      %s269 = ssub.s32 %s13, 1
      %p270 = scmp.lt.s32.totalorder %s22, 1
      %s271 = scalar_select %p270, %s22, 1
      %s272 = scalar_lea.vmem %s0, %s271
      %p273 = pneg %p51
      %p274 = pneg %p48
      %s275 = smul.u32 3, %s23
      %p276 = scmp.lt.s32.totalorder %s22, 1
      %s277 = scalar_select %p276, %s22, 1
      %p278 = scmp.lt.s32.totalorder %s275, 2
      %s279 = scalar_select %p278, %s275, 2
      %s280 = smul.addr %s277, 3
      %s281 = sadd.s32 %s279, %s280
      %s282 = smul.addr %s281, 8
      %s283 = scalar_lea.vmem %s1, %s282
      %p284 = pneg %p79
      %p285 = pneg %p76
      %p286 = scmp.lt.s32.totalorder %s22, 1
      %s287 = scalar_select %p286, %s22, 1
      %s288 = smul.addr %s287, 4
      %s289 = smul.addr %s288, 8
      %s290 = scalar_lea.vmem %s2, %s289
      %p291 = pneg %p105
      %p292 = pneg %p102
      %p293 = pneg %p133
      %p294 = pneg %p130
      %s295 = smul.u32 3, %s23
      %p296 = scmp.lt.s32.totalorder %s22, 1
      %s297 = scalar_select %p296, %s22, 1
      %p298 = scmp.lt.s32.totalorder %s295, 2
      %s299 = scalar_select %p298, %s295, 2
      %s300 = smul.addr %s297, 3
      %s301 = sadd.s32 %s299, %s300
      %s302 = smul.addr %s301, 8
      %s303 = scalar_lea.vmem %s3, %s302
      %p304 = pneg %p161
      %p305 = pneg %p158
      %s306 = smul.u32 3, %s23
      %p307 = scmp.lt.s32.totalorder %s22, 1
      %s308 = scalar_select %p307, %s22, 1
      %p309 = scmp.lt.s32.totalorder %s306, 2
      %s310 = scalar_select %p309, %s306, 2
      %s311 = smul.addr %s308, 3
      %s312 = sadd.s32 %s310, %s311
      %s313 = smul.addr %s312, 4
      %s314 = scalar_lea.vmem %s4, %s313
      %p315 = pneg %p189
      %p316 = pneg %p186
      %p317 = scmp.lt.s32.totalorder %s22, 1
      %s318 = scalar_select %p317, %s22, 1
      %p319 = scmp.lt.s32.totalorder %s23, 0
      %s320 = scalar_select %p319, %s23, 0
      %s321 = sadd.s32 %s320, %s318
      %s322 = scalar_lea.vmem %s5, %s321
      %p323 = pneg %p217
      %p324 = pneg %p214
      %p325 = scmp.lt.s32.totalorder %s22, 1
      %s326 = scalar_select %p325, %s22, 1
      %p327 = scmp.lt.s32.totalorder %s23, 0
      %s328 = scalar_select %p327, %s23, 0
      %s329 = sadd.s32 %s328, %s326
      %s330 = scalar_lea.vmem %s6, %s329
      %p331 = scmp.lt.s32.totalorder %s22, 1
      %s332 = scalar_select %p331, %s22, 1
      %s333 = scalar_lea.vmem %s0, %s332
      %s334 = smul.u32 3, %s23
      %p335 = scmp.lt.s32.totalorder %s22, 1
      %s336 = scalar_select %p335, %s22, 1
      %p337 = scmp.lt.s32.totalorder %s334, 2
      %s338 = scalar_select %p337, %s334, 2
      %s339 = smul.addr %s336, 3
      %s340 = sadd.s32 %s338, %s339
      %s341 = smul.addr %s340, 8
      %s342 = scalar_lea.vmem %s1, %s341
      %s343 = smul.u32 3, %s23
      %p344 = scmp.lt.s32.totalorder %s22, 1
      %s345 = scalar_select %p344, %s22, 1
      %s346 = smul.addr %s345, 4
      %s347 = smul.addr %s346, 8
      %s348 = scalar_lea.vmem %s2, %s347
      %s349 = smul.u32 3, %s23
      %p350 = scmp.lt.s32.totalorder %s22, 1
      %s351 = scalar_select %p350, %s22, 1
      %p352 = scmp.lt.s32.totalorder %s349, 2
      %s353 = scalar_select %p352, %s349, 2
      %s354 = smul.addr %s351, 3
      %s355 = sadd.s32 %s353, %s354
      %s356 = smul.addr %s355, 8
      %s357 = scalar_lea.vmem %s3, %s356
      %s358 = smul.u32 3, %s23
      %s359 = smul.u32 3, %s23
      %p360 = scmp.lt.s32.totalorder %s22, 1
      %s361 = scalar_select %p360, %s22, 1
      %p362 = scmp.lt.s32.totalorder %s359, 2
      %s363 = scalar_select %p362, %s359, 2
      %s364 = smul.addr %s361, 3
      %s365 = sadd.s32 %s363, %s364
      %s366 = smul.addr %s365, 4
      %s367 = scalar_lea.vmem %s4, %s366
      %s368 = smul.u32 3, %s23
      %p369 = scmp.lt.s32.totalorder %s22, 1
      %s370 = scalar_select %p369, %s22, 1
      %p371 = scmp.lt.s32.totalorder %s23, 0
      %s372 = scalar_select %p371, %s23, 0
      %s373 = sadd.s32 %s372, %s370
      %s374 = scalar_lea.vmem %s5, %s373
      %p375 = scmp.lt.s32.totalorder %s22, 1
      %s376 = scalar_select %p375, %s22, 1
      %p377 = scmp.lt.s32.totalorder %s23, 0
      %s378 = scalar_select %p377, %s23, 0
      %s379 = sadd.s32 %s378, %s376
      %s380 = scalar_lea.vmem %s6, %s379
      %v381 = vld [vmem:[%s333] sm:$0x1]
      %v382 = vld [vmem:[%s342] sm:$0xff]
      %v383 = vld [vmem:[%s342 + $0x8] sm:$0xff]
      %v384 = vld [vmem:[%s342 + $0x10] sm:$0xff]
      %v385 = vmul.f32 %v382, 0.25
      %v386 = vmul.f32 %v383, 0.25
      %v387 = vmul.f32 %v384, 0.25
      %v388 = vld [vmem:[%s348] sm:$0xff]
      %v389 = vld [vmem:[%s348 + $0x8] sm:$0xff]
      %v390 = vld [vmem:[%s348 + $0x10] sm:$0xff]
      %v391 = vld [vmem:[%s348 + $0x18] sm:$0xff]
      %vm392 = vcmask 261120
      %v394 = vsel %vm392, %v385, 0
      %v397 = vsel %vm392, %v386, 0
      %v400 = vsel %vm392, %v387, 0
      %402 = vmatprep.subr.mxu0 0.0
      %403 = vmatpush1.msra.mxu0 %v388
      %404 = vmatprep.subr.mxu0 0.0
      %405 = vmatpush1.msra.mxu0 %v389
      %406 = vmatprep.subr.mxu0 0.0
      %407 = vmatpush1.msra.mxu0 %v390
      %408 = vmatprep.subr.mxu0 0.0
      %409 = vmatpush1.msra.mxu0 %v391
      %410 = vmatprep.subr.mxu0 0.0
      %411 = vmatpush1.msra.mxu0 0.0
      %412 = vmatprep.subr.mxu0 0.0
      %413 = vmatpush1.msra.mxu0 0.0
      %414 = vmatprep.subr.mxu0 0.0
      %415 = vmatpush1.msra.mxu0 0.0
      %416 = vmatprep.subr.mxu0 0.0
      %417 = vmatpush1.msra.mxu0 0.0
      %418 = vmatprep.subr.mxu0 0.0
      %419 = vmatpush1.msra.mxu0 0.0
      %420 = vmatprep.subr.mxu0 0.0
      %421 = vmatpush1.msra.mxu0 0.0
      %422 = vmatprep.subr.mxu0 0.0
      %423 = vmatpush1.msra.mxu0 0.0
      %424 = vmatprep.subr.mxu0 0.0
      %425 = vmatpush1.msra.mxu0 0.0
      %426 = vmatprep.subr.mxu0 0.0
      %427 = vmatpush1.msra.mxu0 0.0
      %428 = vmatprep.subr.mxu0 0.0
      %429 = vmatpush1.msra.mxu0 0.0
      %430 = vmatprep.subr.mxu0 0.0
      %431 = vmatpush1.msra.mxu0 0.0
      %432 = vmatprep.subr.mxu0 0.0
      %433 = vmatpush1.msra.mxu0 0.0
      %434 = vmatprep.subr.mxu0 0.0
      %435 = vmatpush1.msra.mxu0 0.0
      %436 = vmatprep.subr.mxu0 0.0
      %437 = vmatpush1.msra.mxu0 0.0
      %438 = vmatprep.subr.mxu0 0.0
      %439 = vmatpush1.msra.mxu0 0.0
      %440 = vmatprep.subr.mxu0 0.0
      %441 = vmatpush1.msra.mxu0 0.0
      %442 = vmatprep.subr.mxu0 0.0
      %443 = vmatpush1.msra.mxu0 0.0
      %444 = vmatprep.subr.mxu0 0.0
      %445 = vmatpush1.msra.mxu0 0.0
      %446 = vmatprep.subr.mxu0 0.0
      %447 = vmatpush1.msra.mxu0 0.0
      %448 = vmatprep.subr.mxu0 0.0
      %449 = vmatpush1.msra.mxu0 0.0
      %450 = vmatprep.subr.mxu0 0.0
      %451 = vmatpush1.msra.mxu0 0.0
      %452 = vmatprep.subr.mxu0 0.0
      %453 = vmatpush1.msra.mxu0 0.0
      %454 = vmatprep.subr.mxu0 0.0
      %455 = vmatpush1.msra.mxu0 0.0
      %456 = vmatprep.subr.mxu0 0.0
      %457 = vmatpush1.msra.mxu0 0.0
      %458 = vmatprep.subr.mxu0 0.0
      %459 = vmatpush1.msra.mxu0 0.0
      %460 = vmatprep.subr.mxu0 0.0
      %461 = vmatpush1.msra.mxu0 0.0
      %462 = vmatprep.subr.mxu0 0.0
      %463 = vmatpush1.msra.mxu0 0.0
      %464 = vmatprep.subr.mxu0 0.0
      %465 = vmatpush1.msra.mxu0 0.0
      %466 = vmatprep.mubr.f32.mxu0 0.0
      %467 = vmatmul.mubr.f32.gmra.mrb[0].mxu0 %v394
      %v468 = vpop.f32.mrb[0].mxu0
      %v469 = vadd.f32 0.0, %v468
      %v470 = vpop.f32.mrb[0].mxu0
      %471 = vmatprep.mubr.f32.mxu0 0.0
      %472 = vmatmul.mubr.f32.gmra.mrb[0].mxu0 %v397
      %v473 = vpop.f32.mrb[0].mxu0
      %v474 = vadd.f32 0.0, %v473
      %v475 = vpop.f32.mrb[0].mxu0
      %476 = vmatprep.mubr.f32.mxu0 0.0
      %477 = vmatmul.mubr.f32.gmra.mrb[0].mxu0 %v400
      %v478 = vpop.f32.mrb[0].mxu0
      %v479 = vadd.f32 0.0, %v478
      %v480 = vpop.f32.mrb[0].mxu0
      %481 = vdwg.mxu0
      %s482 = smul.u32 %s23, 24
      %s483 = scvt.s32.f32 %s482
      %v484 = vlaneseq
      %v485 = vshrl.u32 %v484, 7
      %v486 = vadd.s32 %v485, 8
      %v487 = vadd.s32 %v485, 16
      %v488 = vcvt.s32.f32 %v485
      %v489 = vcvt.s32.f32 %v486
      %v490 = vcvt.s32.f32 %v487
      %v491 = vstv %s483
      %v492 = vadd.f32 %v488, %v491
      %v493 = vadd.f32 %v489, %v491
      %v494 = vadd.f32 %v490, %v491
      %v495 = vlaneseq
      %v496 = vand.u32 %v495, 127
      %v497 = vcvt.s32.f32 %v496
      %v499 = vlaneseq
      %v500 = vshrl.u32 %v499, 7
      %v501 = vsub.s32 0, %v500
      %v502 = vrot.slane %v381, %v501
      %503 = vset.pattern.permute.xlu0 1
      %504 = vperm.xlu0 %503, %v502
      %v505 = vpop.permute.xlu0 %504
      %vm507 = vcmp.ge.f32.partialorder %v492, %v505
      %vm508 = vcmp.ge.f32.partialorder %v493, %v505
      %vm509 = vcmp.ge.f32.partialorder %v494, %v505
      %510 = vset.pattern.permute.xlu0 0
      %511 = vperm.xlu0 %510, %v502
      %v512 = vpop.permute.xlu0 %511
      %vm514 = vcmp.ge.f32.partialorder %v497, %v512
      %vm515 = vmor %vm507, %vm514
      %vm516 = vmor %vm508, %vm514
      %vm517 = vmor %vm509, %vm514
      %v518 = vsel %vm515, -1e+30, %v469
      %v519 = vsel %vm516, -1e+30, %v474
      %v520 = vsel %vm517, -1e+30, %v479
      %vm521 = vcmask 130048
      %v522 = vsel %vm521, %v518, -inf
      %523 = vmax.xlane.f32.xlu0 %v522
      %v524 = vpop.xlane.xlu0 %523
      %v525 = vsel %vm521, %v519, -inf
      %526 = vmax.xlane.f32.xlu0 %v525
      %v527 = vpop.xlane.xlu0 %526
      %v528 = vsel %vm521, %v520, -inf
      %529 = vmax.xlane.f32.xlu0 %v528
      %v530 = vpop.xlane.xlu0 %529
      %v531 = vsub.f32 %v518, %v524
      %v532 = vsub.f32 %v519, %v527
      %v533 = vsub.f32 %v520, %v530
      %v534 = vmul.f32 %v531, 1.442695
      %v535 = vpow.pop %v534
      %v536 = vmul.f32 %v532, 1.442695
      %v537 = vpow.pop %v536
      %v538 = vmul.f32 %v533, 1.442695
      %v539 = vpow.pop %v538
      %v540 = vsel %vm515, 0.0, %v535
      %v541 = vsel %vm516, 0.0, %v537
      %v542 = vsel %vm517, 0.0, %v539
      %v543 = vsel %vm521, %v540, 0.0
      %544 = vadd.xlane.f32.xlu0 %v543
      %v545 = vpop.xlane.xlu0 %544
      %v546 = vsel %vm521, %v541, 0.0
      %547 = vadd.xlane.f32.xlu0 %v546
      %v548 = vpop.xlane.xlu0 %547
      %v549 = vsel %vm521, %v542, 0.0
      %550 = vadd.xlane.f32.xlu0 %v549
      %v551 = vpop.xlane.xlu0 %550
      %vm552 = vcmp.gt.f32.partialorder %v545, 0.0
      %vm553 = vcmp.gt.f32.partialorder %v548, 0.0
      %vm554 = vcmp.gt.f32.partialorder %v551, 0.0
      %v555 = vsel %vm552, %v545, 1.0
      %v556 = vsel %vm553, %v548, 1.0
      %v557 = vsel %vm554, %v551, 1.0
      %v558 = vrcp.pop %v555
      %v559 = vmul.f32 1.0, %v558
      %v560 = vrcp.pop %v556
      %v561 = vmul.f32 1.0, %v560
      %v562 = vrcp.pop %v557
      %v563 = vmul.f32 1.0, %v562
      %v564 = vmul.f32 %v540, %v559
      %v565 = vmul.f32 %v541, %v561
      %v566 = vmul.f32 %v542, %v563
      %567 = vset.pattern.permute.xlu0 2
      %568 = vperm.xlu0 %567, %v502
      %v569 = vpop.permute.xlu0 %568
      %v571 = vmul.f32 %v569, %v492
      %v572 = vmul.f32 %v569, %v493
      %v573 = vmul.f32 %v569, %v494
      %v574 = vsub.f32 %v497, %v571
      %v575 = vsub.f32 %v497, %v572
      %v576 = vsub.f32 %v497, %v573
      %577 = vset.pattern.permute.xlu0 3
      %578 = vperm.xlu0 %577, %v502
      %v579 = vpop.permute.xlu0 %578
      %v581 = vadd.f32 %v574, %v579
      %v582 = vadd.f32 %v575, %v579
      %v583 = vadd.f32 %v576, %v579
      %vm584 = vcmp.ge.f32.partialorder %v581, 0.0
      %vm585 = vcmp.ge.f32.partialorder %v582, 0.0
      %vm586 = vcmp.ge.f32.partialorder %v583, 0.0
      %v587 = vsub.f32 %v574, %v579
      %v588 = vsub.f32 %v575, %v579
      %v589 = vsub.f32 %v576, %v579
      %vm590 = vcmp.le.f32.partialorder %v587, 0.0
      %vm591 = vcmp.le.f32.partialorder %v588, 0.0
      %vm592 = vcmp.le.f32.partialorder %v589, 0.0
      %vm593 = vmand %vm584, %vm590
      %vm594 = vmand %vm585, %vm591
      %vm595 = vmand %vm586, %vm592
      %v596 = vsel %vm593, 1.0, 0.0
      %v597 = vsel %vm594, 1.0, 0.0
      %v598 = vsel %vm595, 1.0, 0.0
      %599 = vst.msk [vmem:[%s357] sm:$0xff] %vm521, %v564
      %600 = vst.msk [vmem:[%s357 + $0x8] sm:$0xff] %vm521, %v565
      %601 = vst.msk [vmem:[%s357 + $0x10] sm:$0xff] %vm521, %v566
      %v602 = vpack.c.bf16 %v597, %v596
      %v603 = vpack.c.bf16 %v598, %v598
      %v606 = vunpack.c.l.b16 %v602
      %v607 = vunpack.c.h.b16 %v602
      %v608 = vunpack.c.l.b16 %v603
      %v609 = vpack.c.b16 %v606, %v606
      %v610 = vpack.c.b16 %v607, %v607
      %v611 = vpack.c.b16 %v608, %v608
      %vm615 = vcmask 125952
      %616 = vst.msk [vmem:[%s367] sm:$0xf] %vm615, %v609
      %617 = vst.msk [vmem:[%s367 + $0x4] sm:$0xf] %vm615, %v610
      %618 = vst.msk [vmem:[%s367 + $0x8] sm:$0xf] %vm615, %v611
      %v619 = vmul.f32 %v564, %v596
      %v620 = vmul.f32 %v565, %v597
      %v621 = vmul.f32 %v566, %v598
      %v622 = vsel %vm521, %v619, 0.0
      %623 = vadd.xlane.f32.xlu0 %v622
      %v624 = vpop.xlane.xlu0 %623
      %v625 = vsel %vm521, %v620, 0.0
      %626 = vadd.xlane.f32.xlu0 %v625
      %v627 = vpop.xlane.xlu0 %626
      %v628 = vsel %vm521, %v621, 0.0
      %629 = vadd.xlane.f32.xlu0 %v628
      %v630 = vpop.xlane.xlu0 %629
      %v631 = vadd.f32 %v624, %v627
      %v632 = vadd.f32 %v631, %v630
      %v633 = vrot.slane %v632, 4
      %v634 = vadd.f32 %v632, %v633
      %v635 = vrot.slane %v634, 2
      %v636 = vadd.f32 %v634, %v635
      %v637 = vrot.slane %v636, 1
      %v638 = vadd.f32 %v636, %v637
      %v639 = vsel %vm521, %v564, 0.0
      %640 = vadd.xlane.f32.xlu0 %v639
      %v641 = vpop.xlane.xlu0 %640
      %v642 = vsel %vm521, %v565, 0.0
      %643 = vadd.xlane.f32.xlu0 %v642
      %v644 = vpop.xlane.xlu0 %643
      %v645 = vsel %vm521, %v566, 0.0
      %646 = vadd.xlane.f32.xlu0 %v645
      %v647 = vpop.xlane.xlu0 %646
      %v648 = vadd.f32 %v641, %v644
      %v649 = vadd.f32 %v648, %v647
      %v650 = vrot.slane %v649, 4
      %v651 = vadd.f32 %v649, %v650
      %v652 = vrot.slane %v651, 2
      %v653 = vadd.f32 %v651, %v652
      %v654 = vrot.slane %v653, 1
      %v655 = vadd.f32 %v653, %v654
      %vm656 = vcmask 0
      %657 = vst.msk [vmem:[%s374] sm:$0x1] %vm656, %v638
      %658 = vst.msk [vmem:[%s380] sm:$0x1] %vm656, %v655
      %s659 = smul.u32 3, %s23
      %p660 = scmp.lt.s32.totalorder %s22, 1
      %s661 = scalar_select %p660, %s22, 1
      %p662 = scmp.lt.s32.totalorder %s659, 2
      %s663 = scalar_select %p662, %s659, 2
      %s664 = smul.addr %s661, 3
      %s665 = sadd.s32 %s663, %s664
      %s666 = smul.addr %s665, 8
      %s667 = scalar_lea.vmem %s3, %s666
      %s668 = smul.u32 3, %s23
      %p669 = scmp.lt.s32.totalorder %s22, 1
      %s670 = scalar_select %p669, %s22, 1
      %p671 = scmp.lt.s32.totalorder %s668, 2
      %s672 = scalar_select %p671, %s668, 2
      %s673 = smul.addr %s670, 3
      %s674 = sadd.s32 %s672, %s673
      %s675 = smul.addr %s674, 4
      %s676 = scalar_lea.vmem %s4, %s675
      %p677 = scmp.lt.s32.totalorder %s22, 1
      %s678 = scalar_select %p677, %s22, 1
      %p679 = scmp.lt.s32.totalorder %s23, 0
      %s680 = scalar_select %p679, %s23, 0
      %s681 = sadd.s32 %s680, %s678
      %s682 = scalar_lea.vmem %s5, %s681
      %p683 = scmp.lt.s32.totalorder %s22, 1
      %s684 = scalar_select %p683, %s22, 1
      %p685 = scmp.lt.s32.totalorder %s23, 0
      %s686 = scalar_select %p685, %s23, 0
      %s687 = sadd.s32 %s686, %s684
      %s688 = scalar_lea.vmem %s6, %s687
      // Predicated region
      $region33: #{tpu_custom_call.1} parent=31 // pred_check
        %p689 = pneg %p130
      $region34: #{tpu_custom_call.1} parent=31 // pred_check_branch
        %691 = sbr.rel (%p689) target = $region36
      $region35: #{tpu_custom_call.1} parent=31 // pred_region
        %s692 = smul.u32 3, %s23
      $region36: #{tpu_custom_call.1} parent=31 // pred_fallthru
        _
      // Predicated region
      $region37: #{tpu_custom_call.1} parent=31 // pred_check
        %p693 = pneg %p158
      $region38: #{tpu_custom_call.1} parent=31 // pred_check_branch
        %695 = sbr.rel (%p693) target = $region40
      $region39: #{tpu_custom_call.1} parent=31 // pred_region
        %s696 = smul.u32 3, %s23
      $region40: #{tpu_custom_call.1} parent=31 // pred_fallthru
        _
      // Predicated region
      $region41: #{tpu_custom_call.1} parent=31 // pred_check
        %p697 = pneg %p186
      $region42: #{tpu_custom_call.1} parent=31 // pred_check_branch
        %699 = sbr.rel (%p697) target = $region44
      $region43: #{tpu_custom_call.1} parent=31 // pred_region
        _
      $region44: #{tpu_custom_call.1} parent=31 // pred_fallthru
        _
      // Predicated region
      $region45: #{tpu_custom_call.1} parent=31 // pred_check
        %p700 = pneg %p214
      $region46: #{tpu_custom_call.1} parent=31 // pred_check_branch
        %702 = sbr.rel (%p700) target = $region48
      $region47: #{tpu_custom_call.1} parent=31 // pred_region
        _
      $region48: #{tpu_custom_call.1} parent=31 // pred_fallthru
        _
    $region32: #{tpu_custom_call.1} parent=5 // pred_fallthru
      _
    %p703 = scmp.le.s32.totalorder 2, %s13
    // Predicated region
    $region49: #{tpu_custom_call.1} parent=5 // pred_check
      %p704 = pneg %p703
    $region50: #{tpu_custom_call.1} parent=5 // pred_check_branch
      %706 = sbr.rel (%p704) target = $region52
    $region51: #{tpu_custom_call.1} parent=5 // pred_region
      %s707 = ssub.s32 %s13, 2
      // Predicated region
      $region53: #{tpu_custom_call.1} parent=51 // pred_check
        %p708 = pneg %p136
      $region54: #{tpu_custom_call.1} parent=51 // pred_check_branch
        %710 = sbr.rel (%p708) target = $region56
      $region55: #{tpu_custom_call.1} parent=51 // pred_region
        %s711 = smul.u32 3, %s25
        %p712 = scmp.lt.s32.totalorder %s24, 1
        %s713 = scalar_select %p712, %s24, 1
        %p714 = scmp.lt.s32.totalorder %s711, 2
        %s715 = scalar_select %p714, %s711, 2
        %s716 = smul.addr %s713, 3
        %s717 = sadd.s32 %s715, %s716
        %s718 = smul.addr %s717, 8
        %s719 = scalar_lea.vmem %s3, %s718
      $region56: #{tpu_custom_call.1} parent=51 // pred_fallthru
        _
      // Predicated region
      $region57: #{tpu_custom_call.1} parent=51 // pred_check
        %p720 = pneg %p164
      $region58: #{tpu_custom_call.1} parent=51 // pred_check_branch
        %722 = sbr.rel (%p720) target = $region60
      $region59: #{tpu_custom_call.1} parent=51 // pred_region
        %s723 = smul.u32 3, %s25
        %p724 = scmp.lt.s32.totalorder %s24, 1
        %s725 = scalar_select %p724, %s24, 1
        %p726 = scmp.lt.s32.totalorder %s723, 2
        %s727 = scalar_select %p726, %s723, 2
        %s728 = smul.addr %s725, 3
        %s729 = sadd.s32 %s727, %s728
        %s730 = smul.addr %s729, 4
        %s731 = scalar_lea.vmem %s4, %s730
      $region60: #{tpu_custom_call.1} parent=51 // pred_fallthru
        _
      // Predicated region
      $region61: #{tpu_custom_call.1} parent=51 // pred_check
        %p732 = pneg %p192
      $region62: #{tpu_custom_call.1} parent=51 // pred_check_branch
        %734 = sbr.rel (%p732) target = $region64
      $region63: #{tpu_custom_call.1} parent=51 // pred_region
        %p735 = scmp.lt.s32.totalorder %s24, 1
        %s736 = scalar_select %p735, %s24, 1
        %p737 = scmp.lt.s32.totalorder %s25, 0
        %s738 = scalar_select %p737, %s25, 0
        %s739 = sadd.s32 %s738, %s736
        %s740 = scalar_lea.vmem %s5, %s739
      $region64: #{tpu_custom_call.1} parent=51 // pred_fallthru
        _
      // Predicated region
      $region65: #{tpu_custom_call.1} parent=51 // pred_check
        %p741 = pneg %p220
      $region66: #{tpu_custom_call.1} parent=51 // pred_check_branch
        %743 = sbr.rel (%p741) target = $region68
      $region67: #{tpu_custom_call.1} parent=51 // pred_region
        %p744 = scmp.lt.s32.totalorder %s24, 1
        %s745 = scalar_select %p744, %s24, 1
        %p746 = scmp.lt.s32.totalorder %s25, 0
        %s747 = scalar_select %p746, %s25, 0
        %s748 = sadd.s32 %s747, %s745
        %s749 = scalar_lea.vmem %s6, %s748
      $region68: #{tpu_custom_call.1} parent=51 // pred_fallthru
        _
    $region52: #{tpu_custom_call.1} parent=5 // pred_fallthru
      _
  $region6: #{tpu_custom_call.1} parent=0 // loop_footer
    %s17 = sadd.s32 1, %s13
  $region7: #{tpu_custom_call.1} parent=0 // loop_footer_branch
    %12 = sbr.rel target = $region3
  $region8: #{tpu_custom_call.1} parent=0 // loop_exit
    _

</llo_original>
